<compile_context>
chip_gen: v7x
topology: tpu7x:2x2x1
jax: 0.10.0
libtpu: 0.0.40
codegen_flags: <defaults>
</compile_context>

<pallas_src>
import numpy as np
import jax
import jax.numpy as jnp
from jax.experimental import pallas as pl
from jax.experimental.pallas import tpu as pltpu

# ----------------------------------------------------------------------------
# static config (mirrors config.model / config.run of the reference module)
# ----------------------------------------------------------------------------
N_GNN = 2
DIM_GNN = 128           # forced by prot_proj output width in the reference
DIM_MLP = 128
LIG_IN_FEATURES = 16
PROT_HIDDEN = 64        # stand-in for ProtBERT hidden size
VDW_N_SHORT = 12        # cfg.vdw_N_short  (static integer exponent)
VDW_N_LONG = 6          # cfg.vdw_N_long

CFG = dict(
    interaction_range=(0.5, 5.0),
    dev_vdw_radii_coeff=0.2,
    vdw_epsilon_scale=(0.0178, 0.0356),
    hydrogen_bond_cutoffs=(-0.7, 0.0),
    metal_ligand_cutoffs=(-0.7, 0.0),
    hydrophobic_cutoffs=(0.0, 1.5),
    rotor_penalty=True,
)


# ----------------------------------------------------------------------------
# Kernel 1: intra-graph MPNN + inter-graph InteractionNet message passing
#           (bf16 MXU inputs, fp32 accumulation, fused update/message weights)
# ----------------------------------------------------------------------------
def gnn_kernel(x_ref, adj_intra_ref, adj_inter_ref, wmu_ref, wint_ref, out_ref):
    x = x_ref[...]                      # (N, D) f32
    adj1 = adj_intra_ref[...]           # (N, N) bf16, adj1[t, s] = 1 for edge s->t
    adj2 = adj_inter_ref[...]           # (N, N) bf16, cross (ligand<->protein) edges

    # intraconv: x_i <- relu(W_upd x_i + sum_{j in N(i)} W_msg x_j)   (aggr='add')
    # W_upd and W_msg are fused along the output dim -> one (D, 2D) matmul.
    for l in range(N_GNN):
        y = jnp.dot(x.astype(jnp.bfloat16), wmu_ref[l],
                    preferred_element_type=jnp.float32)           # (N, 2D)
        upd = y[:, :DIM_GNN]
        msg = y[:, DIM_GNN:]
        agg = jnp.dot(adj1, msg.astype(jnp.bfloat16),
                      preferred_element_type=jnp.float32)
        x = jnp.maximum(upd + agg, 0.0)

    # interconv (InteractionNet + Dropout(eval) = identity):
    # x_i <- x_i + tanh( (sum_j A2[i,j] x_j) W_inter )
    for l in range(N_GNN):
        nbr = jnp.dot(adj2, x.astype(jnp.bfloat16),
                      preferred_element_type=jnp.float32)
        x = x + jnp.tanh(jnp.dot(nbr.astype(jnp.bfloat16), wint_ref[l],
                                 preferred_element_type=jnp.float32))

    out_ref[...] = x


def run_gnn(x, adj_intra, adj_inter, w_msg, w_upd, w_inter):
    # fuse update/message weights: (L, D, 2D);  y[:, :D]=update, y[:, D:]=message
    w_mu = jnp.concatenate([w_upd, w_msg], axis=-1).astype(jnp.bfloat16)
    w_int = w_inter.astype(jnp.bfloat16)
    vmem = pl.BlockSpec(memory_space=pltpu.MemorySpace.VMEM)
    return pl.pallas_call(
        gnn_kernel,
        in_specs=[vmem] * 5,
        out_specs=vmem,
        out_shape=jax.ShapeDtypeStruct(x.shape, jnp.float32),
        compiler_params=pltpu.CompilerParams(vmem_limit_bytes=32 * 1024 * 1024),
    )(x, adj_intra.astype(jnp.bfloat16), adj_inter.astype(jnp.bfloat16),
      w_mu, w_int)


# ----------------------------------------------------------------------------
# Kernel 2: fused per-edge MLPs + physics energies, lane-dense over edges,
#           tiled over an edge grid axis ("parallel" -> both v7x TensorCores)
# ----------------------------------------------------------------------------
def _ipow(x, n):
    """Integer power via repeated squaring (VPU-only, no exp/log)."""
    out = None
    base = x
    while n > 0:
        if n & 1:
            out = base if out is None else out * base
        base = base * base
        n >>= 1
    return out


def energy_kernel(xsrc_ref, xdst_ref, d_ref, rbase_ref, msk_ref, onehot_ref,
                  w1s_ref, w1d_ref, b1_ref, w2_ref, b2_ref,
                  eout_ref, dvdw_ref):
    eps_lo, eps_hi = CFG["vdw_epsilon_scale"]
    hb_s, hb_l = CFG["hydrogen_bond_cutoffs"]
    mt_s, mt_l = CFG["metal_ligand_cutoffs"]
    hp_s, hp_l = CFG["hydrophobic_cutoffs"]
    rng_lo, rng_hi = CFG["interaction_range"]
    dev_coeff = CFG["dev_vdw_radii_coeff"]

    # Fused edge MLPs in transposed orientation (edge index on the lane axis):
    #   h  = relu(W1^T [x_src; x_dst]^T + b1)        -> (2*DIM_MLP, TE)
    #   z  = W2^T h + b2                             -> (2, TE)
    #   z[0] = pre-sigmoid vdw_epsilon, z[1] = pre-tanh dvdw
    h = (jnp.dot(w1s_ref[...], xsrc_ref[...], preferred_element_type=jnp.float32)
         + jnp.dot(w1d_ref[...], xdst_ref[...], preferred_element_type=jnp.float32))
    h = jnp.maximum(h + b1_ref[...], 0.0)
    z = jnp.dot(w2_ref[...], h.astype(jnp.bfloat16),
                preferred_element_type=jnp.float32) + b2_ref[...]
    eps_pre = z[0:1, :]                                   # (1, TE)
    dvdw_pre = z[1:2, :]                                  # (1, TE)

    D = d_ref[...]                                        # (1, TE)
    dvdw = jnp.tanh(dvdw_pre) * dev_coeff                 # (1, TE)
    R = rbase_ref[...] + dvdw                             # (1, TE)
    eps = jax.nn.sigmoid(eps_pre) * (eps_hi - eps_lo) + eps_lo

    # Lennard-Jones: eps * ((R/D)^Ns - 2 (R/D)^Nl)  (out-of-range zeroed below)
    d_safe = jnp.maximum(D, rng_lo)
    ratio = R / d_safe
    r_long = _ipow(ratio, VDW_N_LONG)
    r_short = (r_long * r_long if VDW_N_SHORT == 2 * VDW_N_LONG
               else _ipow(ratio, VDW_N_SHORT))
    lj = eps * (r_short - 2.0 * r_long)

    # linear potential ramp in [0,1]; the (learnable, negative) minima are
    # pre-folded into the mask rows on the wrapper side.
    def ramp(c_s, c_l):
        dev = jnp.clip(D - R, c_s, c_l)
        return (dev - c_l) * (1.0 / (c_s - c_l))

    stacked = jnp.concatenate(
        [lj, ramp(hb_s, hb_l), ramp(mt_s, mt_l), ramp(hp_s, hp_l)], axis=0)  # (4, TE)

    in_range = jnp.logical_and(D >= rng_lo, D <= rng_hi)       # (1, TE)
    stacked = jnp.where(in_range, stacked, 0.0) * msk_ref[...]  # (4, TE)

    # per-tile scatter-by-graph as a tiny matmul: (4, TE) @ (TE, B) -> (4, B)
    partial = jnp.dot(stacked, onehot_ref[...], preferred_element_type=jnp.float32)
    eout_ref[...] = partial[None]                              # (1, 4, B)
    dvdw_ref[...] = jnp.where(in_range, dvdw, 0.0)             # (1, TE) lane-dense


def run_energies(xsrc_t, xdst_t, d_row, rbase_row, masks, onehot,
                 w1t_src, w1t_dst, b1_col, w2t, b2_col, *, tile_e=128):
    dh = 2 * DIM_MLP
    e_pad = xsrc_t.shape[1]
    b = onehot.shape[1]
    t = e_pad // tile_e
    idx_e = lambda i: (0, i)
    idx_c = lambda i: (0, 0)
    in_specs = [
        pl.BlockSpec((DIM_GNN, tile_e), idx_e),        # x[src]^T     bf16
        pl.BlockSpec((DIM_GNN, tile_e), idx_e),        # x[dst]^T     bf16
        pl.BlockSpec((1, tile_e), idx_e),              # D            f32
        pl.BlockSpec((1, tile_e), idx_e),              # vdw radii sum
        pl.BlockSpec((4, tile_e), idx_e),              # masks (minima folded)
        pl.BlockSpec((tile_e, b), lambda i: (i, 0)),   # batch one-hot
        pl.BlockSpec((dh, DIM_GNN), idx_c),            # W1 (src half)^T  bf16
        pl.BlockSpec((dh, DIM_GNN), idx_c),            # W1 (dst half)^T  bf16
        pl.BlockSpec((dh, 1), idx_c),                  # b1
        pl.BlockSpec((2, dh), idx_c),                  # block-diag W2^T  bf16
        pl.BlockSpec((2, 1), idx_c),                   # b2
    ]
    out_specs = (
        pl.BlockSpec((1, 4, b), lambda i: (i, 0, 0)),  # per-tile partial energies
        pl.BlockSpec((1, tile_e), idx_e),              # dvdw (lane-dense)
    )
    out_shape = (
        jax.ShapeDtypeStruct((t, 4, b), jnp.float32),
        jax.ShapeDtypeStruct((1, e_pad), jnp.float32),
    )
    return pl.pallas_call(
        energy_kernel,
        grid=(t,),
        in_specs=in_specs,
        out_specs=out_specs,
        out_shape=out_shape,
        compiler_params=pltpu.CompilerParams(
            dimension_semantics=("parallel",),
            vmem_limit_bytes=32 * 1024 * 1024),
    )(xsrc_t, xdst_t, d_row, rbase_row, masks, onehot,
      w1t_src, w1t_dst, b1_col, w2t, b2_col)


# ----------------------------------------------------------------------------
# PIGNet forward (glue in plain JAX, hot paths in the two kernels)
# ----------------------------------------------------------------------------
def pignet_forward(sample, weights, *, tile_e=128):
    is_lig = sample["is_ligand"]
    lig_idx = jnp.nonzero(is_lig, size=int(is_lig.sum()))[0]
    prot_idx = jnp.nonzero(~is_lig, size=int((~is_lig).sum()))[0]

    # ligand embedding (Linear, no bias) + protein residue projection
    x_lig = sample["lig_x"] @ weights["W_lig"]                      # (Nl, 128)
    residue_repr = sample["prot_hidden"] @ weights["W_proj"]        # (nres, 128)
    x_prot = residue_repr[sample["residue_index"]]                  # (Np, 128)

    N = is_lig.shape[0]
    x = jnp.zeros((N, DIM_GNN), jnp.float32)
    x = x.at[lig_idx].set(x_lig).at[prot_idx].set(x_prot)

    # message passing (Pallas kernel 1)
    x = run_gnn(x, sample["adj_intra"], sample["adj_inter"],
                weights["W_msg"], weights["W_upd"], weights["W_inter"])

    # interaction edges (all ligand-protein pairs within the same graph; static)
    src, dst = sample["edge_i_src"], sample["edge_i_dst"]
    pos = sample["pos"]
    dist = jnp.linalg.norm(pos[src] - pos[dst], axis=-1)                 # (E,)
    rbase = sample["vdw_radii"][src] + sample["vdw_radii"][dst]          # (E,)

    E = src.shape[0]
    e_pad = ((E + tile_e - 1) // tile_e) * tile_e
    pad = e_pad - E

    # edge node features, transposed so E is on the lane axis (no x_cat concat)
    xsrc_t = jnp.pad(x[src], ((0, pad), (0, 0))).T.astype(jnp.bfloat16)  # (D, Ep)
    xdst_t = jnp.pad(x[dst], ((0, pad), (0, 0))).T.astype(jnp.bfloat16)
    d_row = jnp.pad(dist, (0, pad)).reshape(1, e_pad)
    rbase_row = jnp.pad(rbase, (0, pad)).reshape(1, e_pad)

    # physics.interaction_masks, with the (learnable) potential minima folded in
    met, don, acc, hyd = (sample["is_metal"], sample["is_h_donor"],
                          sample["is_h_acceptor"], sample["is_hydrophobic"])
    m_vdw = jnp.ones((E,), jnp.float32)
    m_hb = ((don[src] & acc[dst]) | (acc[src] & don[dst])).astype(jnp.float32)
    m_mt = ((met[src] & (don[dst] | acc[dst]))
            | ((don[src] | acc[src]) & met[dst])).astype(jnp.float32)
    m_hp = (hyd[src] & hyd[dst]).astype(jnp.float32)
    minima_hbond = -(weights["hbond_coeff"] ** 2)
    minima_hydro = -(weights["hydrophobic_coeff"] ** 2)
    masks = jnp.stack([m_vdw, m_hb * minima_hbond,
                       m_mt * minima_hbond, m_hp * minima_hydro], axis=0)  # (4,E)
    masks = jnp.pad(masks, ((0, 0), (0, pad)))

    B = int(sample["batch"].max()) + 1
    onehot = (sample["batch"][src][:, None]
              == jnp.arange(B)[None, :]).astype(jnp.float32)             # (E, B)
    onehot = jnp.pad(onehot, ((0, pad), (0, 0)))

    # fused edge-MLP weights (transposed, bf16)
    w1 = jnp.concatenate([weights["W1_eps"], weights["W1_dvdw"]], axis=1)  # (2D, 2M)
    w1t_src = w1[:DIM_GNN].T.astype(jnp.bfloat16)                          # (2M, D)
    w1t_dst = w1[DIM_GNN:].T.astype(jnp.bfloat16)
    b1_col = jnp.concatenate([weights["b1_eps"], weights["b1_dvdw"]], axis=1).T
    zeros = jnp.zeros_like(weights["W2_eps"])
    w2_fused = jnp.concatenate(
        [jnp.concatenate([weights["W2_eps"], zeros], axis=1),
         jnp.concatenate([zeros, weights["W2_dvdw"]], axis=1)], axis=0)    # (2M, 2)
    w2t = w2_fused.T.astype(jnp.bfloat16)                                  # (2, 2M)
    b2_col = jnp.concatenate([weights["b2_eps"], weights["b2_dvdw"]], axis=1).T

    partial, dvdw_row = run_energies(
        xsrc_t, xdst_t, d_row, rbase_row, masks, onehot,
        w1t_src, w1t_dst, b1_col, w2t, b2_col, tile_e=tile_e)

    # tiny wrapper glue: sum per-tile partials, rotor penalty (linear op, so
    # applying it per energy component equals the reference's per-row divide).
    energies_4b = jnp.sum(partial, axis=0)                      # (4, B)
    penalty = 1.0 + weights["rotor_coeff"] ** 2 * sample["rotor"].reshape(B)
    energies = energies_4b.T / penalty[:, None]                 # (B, 4)
    dvdw_radii = dvdw_row[0, :E]
    return energies, dvdw_radii


# ----------------------------------------------------------------------------
# deterministic synthetic inputs + parameters
# ----------------------------------------------------------------------------
def build_inputs_and_weights():
    key = jax.random.PRNGKey(0)
    ks = list(jax.random.split(key, 24))

    B = 2
    n_lig_per, n_prot_per = 4, 12
    n_per = n_lig_per + n_prot_per
    N = B * n_per

    is_ligand = np.zeros(N, dtype=bool)
    batch = np.zeros(N, dtype=np.int32)
    for g in range(B):
        base = g * n_per
        is_ligand[base:base + n_lig_per] = True
        batch[base:base + n_per] = g

    # dense adjacencies (adj[t, s] = 1 for edge s -> t), block-diagonal by graph
    rng = np.random.default_rng(0)
    same_graph = batch[:, None] == batch[None, :]
    adj_intra = ((rng.random((N, N)) < 0.25) & same_graph
                 & ~np.eye(N, dtype=bool)).astype(np.float32)
    cross = is_ligand[:, None] ^ is_ligand[None, :]
    adj_inter = ((rng.random((N, N)) < 0.3) & same_graph & cross).astype(np.float32)

    # interaction edge list: every (ligand, protein) pair within the same graph
    src, dst = [], []
    for g in range(B):
        base = g * n_per
        for i in range(base, base + n_lig_per):
            for j in range(base + n_lig_per, base + n_per):
                src.append(i)
                dst.append(j)
    src = np.array(src, dtype=np.int32)
    dst = np.array(dst, dtype=np.int32)

    n_res = 10
    sample = dict(
        is_ligand=jnp.asarray(is_ligand),
        batch=jnp.asarray(batch),
        lig_x=jax.random.normal(ks[0], (B * n_lig_per, LIG_IN_FEATURES), jnp.float32),
        prot_hidden=jax.random.normal(ks[1], (n_res, PROT_HIDDEN), jnp.float32),
        residue_index=jax.random.randint(ks[2], (B * n_prot_per,), 0, n_res),
        adj_intra=jnp.asarray(adj_intra),
        adj_inter=jnp.asarray(adj_inter),
        pos=jax.random.uniform(ks[3], (N, 3), jnp.float32, 0.0, 4.0),
        vdw_radii=jax.random.uniform(ks[4], (N,), jnp.float32, 1.2, 2.0),
        is_metal=jax.random.bernoulli(ks[5], 0.05, (N,)),
        is_h_donor=jax.random.bernoulli(ks[6], 0.3, (N,)),
        is_h_acceptor=jax.random.bernoulli(ks[7], 0.3, (N,)),
        is_hydrophobic=jax.random.bernoulli(ks[8], 0.4, (N,)),
        rotor=jnp.array([3.0, 5.0], jnp.float32),
        edge_i_src=jnp.asarray(src),
        edge_i_dst=jnp.asarray(dst),
    )

    def lin(k, fan_in, shape):
        return (jax.random.normal(k, shape, jnp.float32) / np.sqrt(fan_in))

    weights = dict(
        W_lig=lin(ks[9], LIG_IN_FEATURES, (LIG_IN_FEATURES, DIM_GNN)),
        W_proj=lin(ks[10], PROT_HIDDEN, (PROT_HIDDEN, DIM_GNN)),
        W_msg=lin(ks[11], DIM_GNN, (N_GNN, DIM_GNN, DIM_GNN)),
        W_upd=lin(ks[12], DIM_GNN, (N_GNN, DIM_GNN, DIM_GNN)),
        W_inter=lin(ks[13], DIM_GNN, (N_GNN, DIM_GNN, DIM_GNN)),
        W1_eps=lin(ks[14], 2 * DIM_GNN, (2 * DIM_GNN, DIM_MLP)),
        b1_eps=jnp.zeros((1, DIM_MLP), jnp.float32),
        W2_eps=lin(ks[15], DIM_MLP, (DIM_MLP, 1)),
        b2_eps=jnp.zeros((1, 1), jnp.float32),
        W1_dvdw=lin(ks[16], 2 * DIM_GNN, (2 * DIM_GNN, DIM_MLP)),
        b1_dvdw=jnp.zeros((1, DIM_MLP), jnp.float32),
        W2_dvdw=lin(ks[17], DIM_MLP, (DIM_MLP, 1)),
        b2_dvdw=jnp.zeros((1, 1), jnp.float32),
        hbond_coeff=jnp.float32(1.0),
        hydrophobic_coeff=jnp.float32(0.5),
        rotor_coeff=jnp.float32(0.5),
    )
    return sample, weights


if __name__ == "__main__":
    sample, weights = build_inputs_and_weights()
    energies, dvdw_radii = pignet_forward(sample, weights)
    jax.block_until_ready((energies, dvdw_radii))
    assert energies.shape == (2, 4), energies.shape
    assert dvdw_radii.shape == (96,), dvdw_radii.shape
    assert bool(jnp.all(jnp.isfinite(energies))) and bool(jnp.all(jnp.isfinite(dvdw_radii)))
    print("KERNEL_OK")
</pallas_src>

<mosaic_0001>
module attributes {stable_mosaic.version = 11 : i64} {
  func.func @gnn_kernel(%arg0: memref<32x128xf32, #tpu.memory_space<vmem>>, %arg1: memref<32x32xbf16, #tpu.memory_space<vmem>>, %arg2: memref<32x32xbf16, #tpu.memory_space<vmem>>, %arg3: memref<2x128x256xbf16, #tpu.memory_space<vmem>>, %arg4: memref<2x128x128xbf16, #tpu.memory_space<vmem>>, %arg5: memref<32x128xf32, #tpu.memory_space<vmem>>) attributes {dimension_semantics = [], scalar_prefetch = 0 : i64, scratch_operands = 0 : i64, tpu.core_type = #tpu.core_type<tc>} {
    %c0 = arith.constant 0 : index
    %c0_0 = arith.constant 0 : index
    %0 = vector.load %arg0[%c0, %c0_0] : memref<32x128xf32, #tpu.memory_space<vmem>>, vector<32x128xf32>
    %c0_1 = arith.constant 0 : index
    %c0_2 = arith.constant 0 : index
    %1 = vector.load %arg1[%c0_1, %c0_2] : memref<32x32xbf16, #tpu.memory_space<vmem>>, vector<32x32xbf16>
    %c0_3 = arith.constant 0 : index
    %c0_4 = arith.constant 0 : index
    %2 = vector.load %arg2[%c0_3, %c0_4] : memref<32x32xbf16, #tpu.memory_space<vmem>>, vector<32x32xbf16>
    %3 = arith.truncf %0 : vector<32x128xf32> to vector<32x128xbf16>
    %c0_5 = arith.constant 0 : index
    %c0_6 = arith.constant 0 : index
    %c0_7 = arith.constant 0 : index
    %4 = vector.load %arg3[%c0_5, %c0_6, %c0_7] : memref<2x128x256xbf16, #tpu.memory_space<vmem>>, vector<1x128x256xbf16>
    %5 = vector.shape_cast %4 : vector<1x128x256xbf16> to vector<128x256xbf16>
    %cst = arith.constant dense<0.000000e+00> : vector<32x256xf32>
    %6 = tpu.matmul %3, %5, %cst {dimension_numbers = #tpu.dot_dimension_numbers<[1], [0], [0], [1], [0, 0, 1, 1], [], []>} : vector<32x128xbf16>, vector<128x256xbf16>, vector<32x256xf32> -> vector<32x256xf32>
    %7 = vector.extract_strided_slice %6 {offsets = [0, 0], sizes = [32, 128], strides = [1, 1]} : vector<32x256xf32> to vector<32x128xf32>
    %8 = vector.extract_strided_slice %6 {offsets = [0, 128], sizes = [32, 128], strides = [1, 1]} : vector<32x256xf32> to vector<32x128xf32>
    %9 = arith.truncf %8 : vector<32x128xf32> to vector<32x128xbf16>
    %cst_8 = arith.constant dense<0.000000e+00> : vector<32x128xf32>
    %10 = tpu.matmul %1, %9, %cst_8 {dimension_numbers = #tpu.dot_dimension_numbers<[1], [0], [0], [1], [0, 0, 1, 1], [], []>} : vector<32x32xbf16>, vector<32x128xbf16>, vector<32x128xf32> -> vector<32x128xf32>
    %11 = arith.addf %7, %10 : vector<32x128xf32>
    %cst_9 = arith.constant 0.000000e+00 : f32
    %12 = vector.broadcast %cst_9 : f32 to vector<32x128xf32>
    %13 = arith.maximumf %11, %12 : vector<32x128xf32>
    %14 = arith.truncf %13 : vector<32x128xf32> to vector<32x128xbf16>
    %c1 = arith.constant 1 : index
    %c0_10 = arith.constant 0 : index
    %c0_11 = arith.constant 0 : index
    %15 = vector.load %arg3[%c1, %c0_10, %c0_11] : memref<2x128x256xbf16, #tpu.memory_space<vmem>>, vector<1x128x256xbf16>
    %16 = vector.shape_cast %15 : vector<1x128x256xbf16> to vector<128x256xbf16>
    %cst_12 = arith.constant dense<0.000000e+00> : vector<32x256xf32>
    %17 = tpu.matmul %14, %16, %cst_12 {dimension_numbers = #tpu.dot_dimension_numbers<[1], [0], [0], [1], [0, 0, 1, 1], [], []>} : vector<32x128xbf16>, vector<128x256xbf16>, vector<32x256xf32> -> vector<32x256xf32>
    %18 = vector.extract_strided_slice %17 {offsets = [0, 0], sizes = [32, 128], strides = [1, 1]} : vector<32x256xf32> to vector<32x128xf32>
    %19 = vector.extract_strided_slice %17 {offsets = [0, 128], sizes = [32, 128], strides = [1, 1]} : vector<32x256xf32> to vector<32x128xf32>
    %20 = arith.truncf %19 : vector<32x128xf32> to vector<32x128xbf16>
    %cst_13 = arith.constant dense<0.000000e+00> : vector<32x128xf32>
    %21 = tpu.matmul %1, %20, %cst_13 {dimension_numbers = #tpu.dot_dimension_numbers<[1], [0], [0], [1], [0, 0, 1, 1], [], []>} : vector<32x32xbf16>, vector<32x128xbf16>, vector<32x128xf32> -> vector<32x128xf32>
    %22 = arith.addf %18, %21 : vector<32x128xf32>
    %cst_14 = arith.constant 0.000000e+00 : f32
    %23 = vector.broadcast %cst_14 : f32 to vector<32x128xf32>
    %24 = arith.maximumf %22, %23 : vector<32x128xf32>
    %25 = arith.truncf %24 : vector<32x128xf32> to vector<32x128xbf16>
    %cst_15 = arith.constant dense<0.000000e+00> : vector<32x128xf32>
    %26 = tpu.matmul %2, %25, %cst_15 {dimension_numbers = #tpu.dot_dimension_numbers<[1], [0], [0], [1], [0, 0, 1, 1], [], []>} : vector<32x32xbf16>, vector<32x128xbf16>, vector<32x128xf32> -> vector<32x128xf32>
    %27 = arith.truncf %26 : vector<32x128xf32> to vector<32x128xbf16>
    %c0_16 = arith.constant 0 : index
    %c0_17 = arith.constant 0 : index
    %c0_18 = arith.constant 0 : index
    %28 = vector.load %arg4[%c0_16, %c0_17, %c0_18] : memref<2x128x128xbf16, #tpu.memory_space<vmem>>, vector<1x128x128xbf16>
    %29 = vector.shape_cast %28 : vector<1x128x128xbf16> to vector<128x128xbf16>
    %cst_19 = arith.constant dense<0.000000e+00> : vector<32x128xf32>
    %30 = tpu.matmul %27, %29, %cst_19 {dimension_numbers = #tpu.dot_dimension_numbers<[1], [0], [0], [1], [0, 0, 1, 1], [], []>} : vector<32x128xbf16>, vector<128x128xbf16>, vector<32x128xf32> -> vector<32x128xf32>
    %31 = math.tanh %30 : vector<32x128xf32>
    %32 = arith.addf %24, %31 : vector<32x128xf32>
    %33 = arith.truncf %32 : vector<32x128xf32> to vector<32x128xbf16>
    %cst_20 = arith.constant dense<0.000000e+00> : vector<32x128xf32>
    %34 = tpu.matmul %2, %33, %cst_20 {dimension_numbers = #tpu.dot_dimension_numbers<[1], [0], [0], [1], [0, 0, 1, 1], [], []>} : vector<32x32xbf16>, vector<32x128xbf16>, vector<32x128xf32> -> vector<32x128xf32>
    %35 = arith.truncf %34 : vector<32x128xf32> to vector<32x128xbf16>
    %c1_21 = arith.constant 1 : index
    %c0_22 = arith.constant 0 : index
    %c0_23 = arith.constant 0 : index
    %36 = vector.load %arg4[%c1_21, %c0_22, %c0_23] : memref<2x128x128xbf16, #tpu.memory_space<vmem>>, vector<1x128x128xbf16>
    %37 = vector.shape_cast %36 : vector<1x128x128xbf16> to vector<128x128xbf16>
    %cst_24 = arith.constant dense<0.000000e+00> : vector<32x128xf32>
    %38 = tpu.matmul %35, %37, %cst_24 {dimension_numbers = #tpu.dot_dimension_numbers<[1], [0], [0], [1], [0, 0, 1, 1], [], []>} : vector<32x128xbf16>, vector<128x128xbf16>, vector<32x128xf32> -> vector<32x128xf32>
    %39 = math.tanh %38 : vector<32x128xf32>
    %40 = arith.addf %32, %39 : vector<32x128xf32>
    %c0_25 = arith.constant 0 : index
    %c0_26 = arith.constant 0 : index
    %41 = vector.load %arg5[%c0_25, %c0_26] : memref<32x128xf32, #tpu.memory_space<vmem>>, vector<32x128xf32>
    tpu.vector_store %arg5[%c0_25, %c0_26], %40 {strides = array<i32>} : memref<32x128xf32, #tpu.memory_space<vmem>>, vector<32x128xf32>,
    return
  }
}

</mosaic_0001>

<llo_original>
// kernel: tpu_custom_call.1
$region0: #{tpu_custom_call.1}
  #allocation0 [shape = 'u32[]', space=smem, size = 0x4, offset = 0x4, fixed_abs, tag = 'smem constant byte address 0x4 - core index']
  #allocation1 [shape = 'u32[144,128]{1,0:T(1,128)}', space=vmem, size = 0x12000, scoped, tag = 'internal scratch']
  %s0 = inlined_call_operand.hbm [shape: f32[32,128], index: 0, kind: input, shape index: {}]
  %s1 = inlined_call_operand.hbm [shape: bf16[32,32], index: 1, kind: input, shape index: {}]
  %s2 = inlined_call_operand.hbm [shape: bf16[32,32], index: 2, kind: input, shape index: {}]
  %s3 = inlined_call_operand.hbm [shape: bf16[2,128,256], index: 3, kind: input, shape index: {}]
  %s4 = inlined_call_operand.hbm [shape: bf16[2,128,128], index: 4, kind: input, shape index: {}]
  %s5 = inlined_call_operand.hbm [shape: f32[32,128], index: 5, kind: output, shape index: {}]
  %s6 = sld [smem:[#allocation0]]
  $region50: #{tpu_custom_call.1} parent=0
    _
  %s8 = ssub.s32 1, %s6
  %s9 = scalar_select 0, %s8, %s6
  $region1: #{tpu_custom_call.1} parent=0
    #allocation2 [shape = 'u8[16384]{0}', space=vmem, size = 0x4000, scoped, tag = 'input window, operand 0, single buffered']
    #allocation3 [shape = 's32[1]{0}', space=sflag, size = 0x4, scoped, tag = 'scoped memory for tpu_custom_call.1']
    #allocation4 [shape = 's32[1]{0}', space=sflag, size = 0x4, scoped, tag = 'scoped memory for tpu_custom_call.1']
    #allocation5 [shape = 'u8[8192]{0}', space=vmem, size = 0x2000, scoped, tag = 'input window, operand 1, single buffered']
    #allocation6 [shape = 's32[1]{0}', space=sflag, size = 0x4, scoped, tag = 'scoped memory for tpu_custom_call.1']
    #allocation7 [shape = 'u8[8192]{0}', space=vmem, size = 0x2000, scoped, tag = 'input window, operand 2, single buffered']
    #allocation8 [shape = 'u8[131072]{0}', space=vmem, size = 0x20000, scoped, tag = 'input window, operand 3, single buffered']
    #allocation9 [shape = 's32[1]{0}', space=sflag, size = 0x4, scoped, tag = 'scoped memory for tpu_custom_call.1']
    #allocation10 [shape = 'u8[65536]{0}', space=vmem, size = 0x10000, scoped, tag = 'input window, operand 4, single buffered']
    #allocation11 [shape = 'u8[16384]{0}', space=vmem, size = 0x4000, scoped, tag = 'output window, operand 0, single buffered']
    %10 = vsyncpa [#allocation3], 0
    %11 = vsyncpa [#allocation6], 0
    %12 = vsyncpa [#allocation9], 0
    %13 = vsyncpa [#allocation4], 0
    // Predicated region
    $region2: #{tpu_custom_call.1} parent=1 // pred_check
      _
    $region3: #{tpu_custom_call.1} parent=1 // pred_check_branch
      %15 = sbr.rel (0) target = $region5
    $region4: #{tpu_custom_call.1} parent=1 // pred_region
      %s17 = ssub.s32 512, 512
      %18 = vsyncadd [#allocation3], %s17
      %s19 = sshll.u32 [#allocation2], 4
      %s20 = int_to_ptr.vmem [resolvable:$true] %s19
      %25 = dma.hbm_to_vmem [thread:$0]  %s0, 512, %s20, [#allocation3], 128, 128, 8
    $region5: #{tpu_custom_call.1} parent=1 // pred_fallthru
      _
    // Predicated region
    $region6: #{tpu_custom_call.1} parent=1 // pred_check
      _
    $region7: #{tpu_custom_call.1} parent=1 // pred_check_branch
      %27 = sbr.rel (0) target = $region9
    $region8: #{tpu_custom_call.1} parent=1 // pred_region
      %s29 = ssub.s32 256, 256
      %30 = vsyncadd [#allocation6], %s29
      %s31 = sshll.u32 [#allocation5], 4
      %s32 = int_to_ptr.vmem [resolvable:$true] %s31
      %37 = dma.hbm_to_vmem [thread:$0]  %s1, 256, %s32, [#allocation6], 64, 64, 4
    $region9: #{tpu_custom_call.1} parent=1 // pred_fallthru
      _
    // Predicated region
    $region10: #{tpu_custom_call.1} parent=1 // pred_check
      _
    $region11: #{tpu_custom_call.1} parent=1 // pred_check_branch
      %39 = sbr.rel (0) target = $region13
    $region12: #{tpu_custom_call.1} parent=1 // pred_region
      %s41 = ssub.s32 256, 256
      %42 = vsyncadd [#allocation6], %s41
      %s43 = sshll.u32 [#allocation7], 4
      %s44 = int_to_ptr.vmem [resolvable:$true] %s43
      %49 = dma.hbm_to_vmem [thread:$0]  %s2, 256, %s44, [#allocation6], 64, 64, 4
    $region13: #{tpu_custom_call.1} parent=1 // pred_fallthru
      _
    // Predicated region
    $region14: #{tpu_custom_call.1} parent=1 // pred_check
      _
    $region15: #{tpu_custom_call.1} parent=1 // pred_check_branch
      %51 = sbr.rel (0) target = $region17
    $region16: #{tpu_custom_call.1} parent=1 // pred_region
      %s53 = ssub.s32 4096, 4096
      %54 = vsyncadd [#allocation9], %s53
      %s55 = sshll.u32 [#allocation8], 4
      %s56 = int_to_ptr.vmem [resolvable:$true] %s55
      %61 = dma.hbm_to_vmem [thread:$0]  %s3, 4096, %s56, [#allocation9], 128, 128, 8
    $region17: #{tpu_custom_call.1} parent=1 // pred_fallthru
      _
    // Predicated region
    $region18: #{tpu_custom_call.1} parent=1 // pred_check
      _
    $region19: #{tpu_custom_call.1} parent=1 // pred_check_branch
      %63 = sbr.rel (0) target = $region21
    $region20: #{tpu_custom_call.1} parent=1 // pred_region
      %s65 = ssub.s32 2048, 2048
      %66 = vsyncadd [#allocation9], %s65
      %s67 = sshll.u32 [#allocation10], 4
      %s68 = int_to_ptr.vmem [resolvable:$true] %s67
      %73 = dma.hbm_to_vmem [thread:$0]  %s4, 2048, %s68, [#allocation9], 64, 64, 4
    $region21: #{tpu_custom_call.1} parent=1 // pred_fallthru
      _
    // Predicated region
    $region22: #{tpu_custom_call.1} parent=1 // pred_check
      _
    $region23: #{tpu_custom_call.1} parent=1 // pred_check_branch
      %75 = sbr.rel (0) target = $region25
    $region24: #{tpu_custom_call.1} parent=1 // pred_region
      %76 = dma.done [#allocation3], 512
    $region25: #{tpu_custom_call.1} parent=1 // pred_fallthru
      _
    // Predicated region
    $region26: #{tpu_custom_call.1} parent=1 // pred_check
      _
    $region27: #{tpu_custom_call.1} parent=1 // pred_check_branch
      %78 = sbr.rel (0) target = $region29
    $region28: #{tpu_custom_call.1} parent=1 // pred_region
      %79 = dma.done [#allocation6], 256
    $region29: #{tpu_custom_call.1} parent=1 // pred_fallthru
      _
    // Predicated region
    $region30: #{tpu_custom_call.1} parent=1 // pred_check
      _
    $region31: #{tpu_custom_call.1} parent=1 // pred_check_branch
      %81 = sbr.rel (0) target = $region33
    $region32: #{tpu_custom_call.1} parent=1 // pred_region
      %82 = dma.done [#allocation6], 256
    $region33: #{tpu_custom_call.1} parent=1 // pred_fallthru
      _
    // Predicated region
    $region34: #{tpu_custom_call.1} parent=1 // pred_check
      _
    $region35: #{tpu_custom_call.1} parent=1 // pred_check_branch
      %84 = sbr.rel (0) target = $region37
    $region36: #{tpu_custom_call.1} parent=1 // pred_region
      %85 = dma.done [#allocation9], 4096
    $region37: #{tpu_custom_call.1} parent=1 // pred_fallthru
      _
    // Predicated region
    $region38: #{tpu_custom_call.1} parent=1 // pred_check
      _
    $region39: #{tpu_custom_call.1} parent=1 // pred_check_branch
      %87 = sbr.rel (0) target = $region41
    $region40: #{tpu_custom_call.1} parent=1 // pred_region
      %88 = dma.done [#allocation9], 2048
    $region41: #{tpu_custom_call.1} parent=1 // pred_fallthru
      _
    %v90 = vld [vmem:[#allocation2] sm:$0xff]
    %v91 = vld [vmem:[#allocation2 + $0x8] sm:$0xff]
    %v92 = vld [vmem:[#allocation2 + $0x10] sm:$0xff]
    %v93 = vld [vmem:[#allocation2 + $0x18] sm:$0xff]
    %v94 = vld [vmem:[#allocation5] sm:$0xf]
    %v95 = vld [vmem:[#allocation5 + $0x4] sm:$0xf]
    %v96 = vld [vmem:[#allocation5 + $0x8] sm:$0xf]
    %v97 = vld [vmem:[#allocation5 + $0xc] sm:$0xf]
    %v98 = vld [vmem:[#allocation7] sm:$0xf]
    %v99 = vld [vmem:[#allocation7 + $0x4] sm:$0xf]
    %v100 = vld [vmem:[#allocation7 + $0x8] sm:$0xf]
    %v101 = vld [vmem:[#allocation7 + $0xc] sm:$0xf]
    %v102 = vpack.c.bf16 %v91, %v90
    %v103 = vpack.c.bf16 %v93, %v92
    %v104 = vld [vmem:[#allocation8] sm:$0xff]
    %v105 = vld [vmem:[#allocation8 + $0x8] sm:$0xff]
    %v106 = vld [vmem:[#allocation8 + $0x10] sm:$0xff]
    %v107 = vld [vmem:[#allocation8 + $0x18] sm:$0xff]
    %v108 = vld [vmem:[#allocation8 + $0x20] sm:$0xff]
    %v109 = vld [vmem:[#allocation8 + $0x28] sm:$0xff]
    %v110 = vld [vmem:[#allocation8 + $0x30] sm:$0xff]
    %v111 = vld [vmem:[#allocation8 + $0x38] sm:$0xff]
    %v112 = vld [vmem:[#allocation8 + $0x40] sm:$0xff]
    %v113 = vld [vmem:[#allocation8 + $0x48] sm:$0xff]
    %v114 = vld [vmem:[#allocation8 + $0x50] sm:$0xff]
    %v115 = vld [vmem:[#allocation8 + $0x58] sm:$0xff]
    %v116 = vld [vmem:[#allocation8 + $0x60] sm:$0xff]
    %v117 = vld [vmem:[#allocation8 + $0x68] sm:$0xff]
    %v118 = vld [vmem:[#allocation8 + $0x70] sm:$0xff]
    %v119 = vld [vmem:[#allocation8 + $0x78] sm:$0xff]
    %v136 = vunpack.c.l.b16 %v104
    %v137 = vunpack.c.h.b16 %v104
    %v138 = vunpack.c.l.b16 %v105
    %v139 = vunpack.c.h.b16 %v105
    %v140 = vunpack.c.l.b16 %v106
    %v141 = vunpack.c.h.b16 %v106
    %v142 = vunpack.c.l.b16 %v107
    %v143 = vunpack.c.h.b16 %v107
    %v144 = vunpack.c.l.b16 %v108
    %v145 = vunpack.c.h.b16 %v108
    %v146 = vunpack.c.l.b16 %v109
    %v147 = vunpack.c.h.b16 %v109
    %v148 = vunpack.c.l.b16 %v110
    %v149 = vunpack.c.h.b16 %v110
    %v150 = vunpack.c.l.b16 %v111
    %v151 = vunpack.c.h.b16 %v111
    %v152 = vunpack.c.l.b16 %v112
    %v153 = vunpack.c.h.b16 %v112
    %v154 = vunpack.c.l.b16 %v113
    %v155 = vunpack.c.h.b16 %v113
    %v156 = vunpack.c.l.b16 %v114
    %v157 = vunpack.c.h.b16 %v114
    %v158 = vunpack.c.l.b16 %v115
    %v159 = vunpack.c.h.b16 %v115
    %v160 = vunpack.c.l.b16 %v116
    %v161 = vunpack.c.h.b16 %v116
    %v162 = vunpack.c.l.b16 %v117
    %v163 = vunpack.c.h.b16 %v117
    %v164 = vunpack.c.l.b16 %v118
    %v165 = vunpack.c.h.b16 %v118
    %v166 = vunpack.c.l.b16 %v119
    %v167 = vunpack.c.h.b16 %v119
    %v168 = vpack.c.b16 %v138, %v136
    %v169 = vpack.c.b16 %v139, %v137
    %v170 = vpack.c.b16 %v142, %v140
    %v171 = vpack.c.b16 %v143, %v141
    %v172 = vpack.c.b16 %v146, %v144
    %v173 = vpack.c.b16 %v147, %v145
    %v174 = vpack.c.b16 %v150, %v148
    %v175 = vpack.c.b16 %v151, %v149
    %v176 = vpack.c.b16 %v154, %v152
    %v177 = vpack.c.b16 %v155, %v153
    %v178 = vpack.c.b16 %v158, %v156
    %v179 = vpack.c.b16 %v159, %v157
    %v180 = vpack.c.b16 %v162, %v160
    %v181 = vpack.c.b16 %v163, %v161
    %v182 = vpack.c.b16 %v166, %v164
    %v183 = vpack.c.b16 %v167, %v165
    %200 = vmatprep.subr.bf16.mxu0 %v169
    %201 = vmatpush1.bf16.msra.mxu0 %v168
    %202 = vmatprep.subr.bf16.mxu0 %v171
    %203 = vmatpush1.bf16.msra.mxu0 %v170
    %204 = vmatprep.subr.bf16.mxu0 %v173
    %205 = vmatpush1.bf16.msra.mxu0 %v172
    %206 = vmatprep.subr.bf16.mxu0 %v175
    %207 = vmatpush1.bf16.msra.mxu0 %v174
    %208 = vmatprep.subr.bf16.mxu0 %v177
    %209 = vmatpush1.bf16.msra.mxu0 %v176
    %210 = vmatprep.subr.bf16.mxu0 %v179
    %211 = vmatpush1.bf16.msra.mxu0 %v178
    %212 = vmatprep.subr.bf16.mxu0 %v181
    %213 = vmatpush1.bf16.msra.mxu0 %v180
    %214 = vmatprep.subr.bf16.mxu0 %v183
    %215 = vmatpush1.bf16.msra.mxu0 %v182
    %216 = vmatprep.subr.bf16.mxu0 0
    %217 = vmatpush1.bf16.msra.mxu0 0
    %218 = vmatprep.subr.bf16.mxu0 0
    %219 = vmatpush1.bf16.msra.mxu0 0
    %220 = vmatprep.subr.bf16.mxu0 0
    %221 = vmatpush1.bf16.msra.mxu0 0
    %222 = vmatprep.subr.bf16.mxu0 0
    %223 = vmatpush1.bf16.msra.mxu0 0
    %224 = vmatprep.subr.bf16.mxu0 0
    %225 = vmatpush1.bf16.msra.mxu0 0
    %226 = vmatprep.subr.bf16.mxu0 0
    %227 = vmatpush1.bf16.msra.mxu0 0
    %228 = vmatprep.subr.bf16.mxu0 0
    %229 = vmatpush1.bf16.msra.mxu0 0
    %230 = vmatprep.subr.bf16.mxu0 0
    %231 = vmatpush1.bf16.msra.mxu0 0
    %232 = vmatprep.mubr.bf16.mxu0 0
    %233 = vmatmul.mubr.bf16.gmra.mrb[0].mxu0 %v102
    %v234 = vpop.f32.mrb[0].mxu0
    %v235 = vadd.f32 0.0, %v234
    %v236 = vpop.f32.mrb[0].mxu0
    %v237 = vadd.f32 0.0, %v236
    %v238 = vpop.f32.mrb[0].mxu0
    %v239 = vadd.f32 0.0, %v238
    %v240 = vpop.f32.mrb[0].mxu0
    %v241 = vadd.f32 0.0, %v240
    %242 = vmatprep.mubr.bf16.mxu0 0
    %243 = vmatmul.mubr.bf16.gmra.mrb[0].mxu0 %v103
    %v244 = vpop.f32.mrb[0].mxu0
    %v245 = vadd.f32 0.0, %v244
    %v246 = vpop.f32.mrb[0].mxu0
    %v247 = vadd.f32 0.0, %v246
    %v248 = vpop.f32.mrb[0].mxu0
    %v249 = vadd.f32 0.0, %v248
    %v250 = vpop.f32.mrb[0].mxu0
    %v251 = vadd.f32 0.0, %v250
    %252 = vdwg.mxu0
    %v253 = vpack.c.bf16 %v241, %v237
    %v254 = vpack.c.bf16 %v251, %v247
    %v259 = vunpack.c.l.b16 %v94
    %v260 = vunpack.c.l.b16 %v95
    %v261 = vunpack.c.l.b16 %v96
    %v262 = vunpack.c.l.b16 %v97
    %v263 = vpack.c.b16 %v260, %v259
    %v264 = vpack.c.b16 %v262, %v261
    %vm265 = vcmask 261120
    %v267 = vsel %vm265, %v263, 0
    %v270 = vsel %vm265, %v264, 0
    %272 = vmatprep.subr.bf16.mxu0 0
    %273 = vmatpush1.bf16.msra.mxu0 %v253
    %274 = vmatprep.subr.bf16.mxu0 0
    %275 = vmatpush1.bf16.msra.mxu0 %v254
    %276 = vmatprep.subr.bf16.mxu0 0
    %277 = vmatpush1.bf16.msra.mxu0 0
    %278 = vmatprep.subr.bf16.mxu0 0
    %279 = vmatpush1.bf16.msra.mxu0 0
    %280 = vmatprep.subr.bf16.mxu0 0
    %281 = vmatpush1.bf16.msra.mxu0 0
    %282 = vmatprep.subr.bf16.mxu0 0
    %283 = vmatpush1.bf16.msra.mxu0 0
    %284 = vmatprep.subr.bf16.mxu0 0
    %285 = vmatpush1.bf16.msra.mxu0 0
    %286 = vmatprep.subr.bf16.mxu0 0
    %287 = vmatpush1.bf16.msra.mxu0 0
    %288 = vmatprep.subr.bf16.mxu0 0
    %289 = vmatpush1.bf16.msra.mxu0 0
    %290 = vmatprep.subr.bf16.mxu0 0
    %291 = vmatpush1.bf16.msra.mxu0 0
    %292 = vmatprep.subr.bf16.mxu0 0
    %293 = vmatpush1.bf16.msra.mxu0 0
    %294 = vmatprep.subr.bf16.mxu0 0
    %295 = vmatpush1.bf16.msra.mxu0 0
    %296 = vmatprep.subr.bf16.mxu0 0
    %297 = vmatpush1.bf16.msra.mxu0 0
    %298 = vmatprep.subr.bf16.mxu0 0
    %299 = vmatpush1.bf16.msra.mxu0 0
    %300 = vmatprep.subr.bf16.mxu0 0
    %301 = vmatpush1.bf16.msra.mxu0 0
    %302 = vmatprep.subr.bf16.mxu0 0
    %303 = vmatpush1.bf16.msra.mxu0 0
    %304 = vmatprep.mubr.bf16.mxu0 0
    %305 = vmatmul.mubr.bf16.gmra.mrb[0].mxu0 %v267
    %v306 = vpop.f32.mrb[0].mxu0
    %v307 = vadd.f32 0.0, %v306
    %v308 = vpop.f32.mrb[0].mxu0
    %v309 = vpop.f32.mrb[0].mxu0
    %v310 = vadd.f32 0.0, %v309
    %v311 = vpop.f32.mrb[0].mxu0
    %312 = vmatprep.mubr.bf16.mxu0 0
    %313 = vmatmul.mubr.bf16.gmra.mrb[0].mxu0 %v270
    %v314 = vpop.f32.mrb[0].mxu0
    %v315 = vadd.f32 0.0, %v314
    %v316 = vpop.f32.mrb[0].mxu0
    %v317 = vpop.f32.mrb[0].mxu0
    %v318 = vadd.f32 0.0, %v317
    %v319 = vpop.f32.mrb[0].mxu0
    %320 = vdwg.mxu0
    %v321 = vadd.f32 %v235, %v307
    %v322 = vadd.f32 %v239, %v310
    %v323 = vadd.f32 %v245, %v315
    %v324 = vadd.f32 %v249, %v318
    %v325 = vmax.f32 %v321, 0.0
    %v326 = vmax.f32 %v322, 0.0
    %v327 = vmax.f32 %v323, 0.0
    %v328 = vmax.f32 %v324, 0.0
    %v329 = vpack.c.bf16 %v326, %v325
    %v330 = vpack.c.bf16 %v328, %v327
    %s331 = scalar_lea.vmem [#allocation8], 128
    %v332 = vld [vmem:[%s331] sm:$0xff]
    %v333 = vld [vmem:[%s331 + $0x8] sm:$0xff]
    %v334 = vld [vmem:[%s331 + $0x10] sm:$0xff]
    %v335 = vld [vmem:[%s331 + $0x18] sm:$0xff]
    %v336 = vld [vmem:[%s331 + $0x20] sm:$0xff]
    %v337 = vld [vmem:[%s331 + $0x28] sm:$0xff]
    %v338 = vld [vmem:[%s331 + $0x30] sm:$0xff]
    %v339 = vld [vmem:[%s331 + $0x38] sm:$0xff]
    %v340 = vld [vmem:[%s331 + $0x40] sm:$0xff]
    %v341 = vld [vmem:[%s331 + $0x48] sm:$0xff]
    %v342 = vld [vmem:[%s331 + $0x50] sm:$0xff]
    %v343 = vld [vmem:[%s331 + $0x58] sm:$0xff]
    %v344 = vld [vmem:[%s331 + $0x60] sm:$0xff]
    %v345 = vld [vmem:[%s331 + $0x68] sm:$0xff]
    %v346 = vld [vmem:[%s331 + $0x70] sm:$0xff]
    %v347 = vld [vmem:[%s331 + $0x78] sm:$0xff]
    %v364 = vunpack.c.l.b16 %v332
    %v365 = vunpack.c.h.b16 %v332
    %v366 = vunpack.c.l.b16 %v333
    %v367 = vunpack.c.h.b16 %v333
    %v368 = vunpack.c.l.b16 %v334
    %v369 = vunpack.c.h.b16 %v334
    %v370 = vunpack.c.l.b16 %v335
    %v371 = vunpack.c.h.b16 %v335
    %v372 = vunpack.c.l.b16 %v336
    %v373 = vunpack.c.h.b16 %v336
    %v374 = vunpack.c.l.b16 %v337
    %v375 = vunpack.c.h.b16 %v337
    %v376 = vunpack.c.l.b16 %v338
    %v377 = vunpack.c.h.b16 %v338
    %v378 = vunpack.c.l.b16 %v339
    %v379 = vunpack.c.h.b16 %v339
    %v380 = vunpack.c.l.b16 %v340
    %v381 = vunpack.c.h.b16 %v340
    %v382 = vunpack.c.l.b16 %v341
    %v383 = vunpack.c.h.b16 %v341
    %v384 = vunpack.c.l.b16 %v342
    %v385 = vunpack.c.h.b16 %v342
    %v386 = vunpack.c.l.b16 %v343
    %v387 = vunpack.c.h.b16 %v343
    %v388 = vunpack.c.l.b16 %v344
    %v389 = vunpack.c.h.b16 %v344
    %v390 = vunpack.c.l.b16 %v345
    %v391 = vunpack.c.h.b16 %v345
    %v392 = vunpack.c.l.b16 %v346
    %v393 = vunpack.c.h.b16 %v346
    %v394 = vunpack.c.l.b16 %v347
    %v395 = vunpack.c.h.b16 %v347
    %v396 = vpack.c.b16 %v366, %v364
    %v397 = vpack.c.b16 %v367, %v365
    %v398 = vpack.c.b16 %v370, %v368
    %v399 = vpack.c.b16 %v371, %v369
    %v400 = vpack.c.b16 %v374, %v372
    %v401 = vpack.c.b16 %v375, %v373
    %v402 = vpack.c.b16 %v378, %v376
    %v403 = vpack.c.b16 %v379, %v377
    %v404 = vpack.c.b16 %v382, %v380
    %v405 = vpack.c.b16 %v383, %v381
    %v406 = vpack.c.b16 %v386, %v384
    %v407 = vpack.c.b16 %v387, %v385
    %v408 = vpack.c.b16 %v390, %v388
    %v409 = vpack.c.b16 %v391, %v389
    %v410 = vpack.c.b16 %v394, %v392
    %v411 = vpack.c.b16 %v395, %v393
    %428 = vmatprep.subr.bf16.mxu0 %v397
    %429 = vmatpush1.bf16.msra.mxu0 %v396
    %430 = vmatprep.subr.bf16.mxu0 %v399
    %431 = vmatpush1.bf16.msra.mxu0 %v398
    %432 = vmatprep.subr.bf16.mxu0 %v401
    %433 = vmatpush1.bf16.msra.mxu0 %v400
    %434 = vmatprep.subr.bf16.mxu0 %v403
    %435 = vmatpush1.bf16.msra.mxu0 %v402
    %436 = vmatprep.subr.bf16.mxu0 %v405
    %437 = vmatpush1.bf16.msra.mxu0 %v404
    %438 = vmatprep.subr.bf16.mxu0 %v407
    %439 = vmatpush1.bf16.msra.mxu0 %v406
    %440 = vmatprep.subr.bf16.mxu0 %v409
    %441 = vmatpush1.bf16.msra.mxu0 %v408
    %442 = vmatprep.subr.bf16.mxu0 %v411
    %443 = vmatpush1.bf16.msra.mxu0 %v410
    %444 = vmatprep.subr.bf16.mxu0 0
    %445 = vmatpush1.bf16.msra.mxu0 0
    %446 = vmatprep.subr.bf16.mxu0 0
    %447 = vmatpush1.bf16.msra.mxu0 0
    %448 = vmatprep.subr.bf16.mxu0 0
    %449 = vmatpush1.bf16.msra.mxu0 0
    %450 = vmatprep.subr.bf16.mxu0 0
    %451 = vmatpush1.bf16.msra.mxu0 0
    %452 = vmatprep.subr.bf16.mxu0 0
    %453 = vmatpush1.bf16.msra.mxu0 0
    %454 = vmatprep.subr.bf16.mxu0 0
    %455 = vmatpush1.bf16.msra.mxu0 0
    %456 = vmatprep.subr.bf16.mxu0 0
    %457 = vmatpush1.bf16.msra.mxu0 0
    %458 = vmatprep.subr.bf16.mxu0 0
    %459 = vmatpush1.bf16.msra.mxu0 0
    %460 = vmatprep.mubr.bf16.mxu0 0
    %461 = vmatmul.mubr.bf16.gmra.mrb[0].mxu0 %v329
    %v462 = vpop.f32.mrb[0].mxu0
    %v463 = vadd.f32 0.0, %v462
    %v464 = vpop.f32.mrb[0].mxu0
    %v465 = vadd.f32 0.0, %v464
    %v466 = vpop.f32.mrb[0].mxu0
    %v467 = vadd.f32 0.0, %v466
    %v468 = vpop.f32.mrb[0].mxu0
    %v469 = vadd.f32 0.0, %v468
    %470 = vmatprep.mubr.bf16.mxu0 0
    %471 = vmatmul.mubr.bf16.gmra.mrb[0].mxu0 %v330
    %v472 = vpop.f32.mrb[0].mxu0
    %v473 = vadd.f32 0.0, %v472
    %v474 = vpop.f32.mrb[0].mxu0
    %v475 = vadd.f32 0.0, %v474
    %v476 = vpop.f32.mrb[0].mxu0
    %v477 = vadd.f32 0.0, %v476
    %v478 = vpop.f32.mrb[0].mxu0
    %v479 = vadd.f32 0.0, %v478
    %480 = vdwg.mxu0
    %v481 = vpack.c.bf16 %v469, %v465
    %v482 = vpack.c.bf16 %v479, %v475
    %483 = vmatprep.subr.bf16.mxu0 0
    %484 = vmatpush1.bf16.msra.mxu0 %v481
    %485 = vmatprep.subr.bf16.mxu0 0
    %486 = vmatpush1.bf16.msra.mxu0 %v482
    %487 = vmatprep.subr.bf16.mxu0 0
    %488 = vmatpush1.bf16.msra.mxu0 0
    %489 = vmatprep.subr.bf16.mxu0 0
    %490 = vmatpush1.bf16.msra.mxu0 0
    %491 = vmatprep.subr.bf16.mxu0 0
    %492 = vmatpush1.bf16.msra.mxu0 0
    %493 = vmatprep.subr.bf16.mxu0 0
    %494 = vmatpush1.bf16.msra.mxu0 0
    %495 = vmatprep.subr.bf16.mxu0 0
    %496 = vmatpush1.bf16.msra.mxu0 0
    %497 = vmatprep.subr.bf16.mxu0 0
    %498 = vmatpush1.bf16.msra.mxu0 0
    %499 = vmatprep.subr.bf16.mxu0 0
    %500 = vmatpush1.bf16.msra.mxu0 0
    %501 = vmatprep.subr.bf16.mxu0 0
    %502 = vmatpush1.bf16.msra.mxu0 0
    %503 = vmatprep.subr.bf16.mxu0 0
    %504 = vmatpush1.bf16.msra.mxu0 0
    %505 = vmatprep.subr.bf16.mxu0 0
    %506 = vmatpush1.bf16.msra.mxu0 0
    %507 = vmatprep.subr.bf16.mxu0 0
    %508 = vmatpush1.bf16.msra.mxu0 0
    %509 = vmatprep.subr.bf16.mxu0 0
    %510 = vmatpush1.bf16.msra.mxu0 0
    %511 = vmatprep.subr.bf16.mxu0 0
    %512 = vmatpush1.bf16.msra.mxu0 0
    %513 = vmatprep.subr.bf16.mxu0 0
    %514 = vmatpush1.bf16.msra.mxu0 0
    %515 = vmatprep.mubr.bf16.mxu0 0
    %516 = vmatmul.mubr.bf16.gmra.mrb[0].mxu0 %v267
    %v517 = vpop.f32.mrb[0].mxu0
    %v518 = vadd.f32 0.0, %v517
    %v519 = vpop.f32.mrb[0].mxu0
    %v520 = vpop.f32.mrb[0].mxu0
    %v521 = vadd.f32 0.0, %v520
    %v522 = vpop.f32.mrb[0].mxu0
    %523 = vmatprep.mubr.bf16.mxu0 0
    %524 = vmatmul.mubr.bf16.gmra.mrb[0].mxu0 %v270
    %v525 = vpop.f32.mrb[0].mxu0
    %v526 = vadd.f32 0.0, %v525
    %v527 = vpop.f32.mrb[0].mxu0
    %v528 = vpop.f32.mrb[0].mxu0
    %v529 = vadd.f32 0.0, %v528
    %v530 = vpop.f32.mrb[0].mxu0
    %531 = vdwg.mxu0
    %v532 = vadd.f32 %v463, %v518
    %v533 = vadd.f32 %v467, %v521
    %v534 = vadd.f32 %v473, %v526
    %v535 = vadd.f32 %v477, %v529
    %v536 = vmax.f32 %v532, 0.0
    %v537 = vmax.f32 %v533, 0.0
    %v538 = vmax.f32 %v534, 0.0
    %v539 = vmax.f32 %v535, 0.0
    %v540 = vpack.c.bf16 %v537, %v536
    %v541 = vpack.c.bf16 %v539, %v538
    %v546 = vunpack.c.l.b16 %v98
    %v547 = vunpack.c.l.b16 %v99
    %v548 = vunpack.c.l.b16 %v100
    %v549 = vunpack.c.l.b16 %v101
    %v550 = vpack.c.b16 %v547, %v546
    %v551 = vpack.c.b16 %v549, %v548
    %v553 = vsel %vm265, %v550, 0
    %v556 = vsel %vm265, %v551, 0
    %558 = vmatprep.subr.bf16.mxu0 0
    %559 = vmatpush1.bf16.msra.mxu0 %v540
    %560 = vmatprep.subr.bf16.mxu0 0
    %561 = vmatpush1.bf16.msra.mxu0 %v541
    %562 = vmatprep.subr.bf16.mxu0 0
    %563 = vmatpush1.bf16.msra.mxu0 0
    %564 = vmatprep.subr.bf16.mxu0 0
    %565 = vmatpush1.bf16.msra.mxu0 0
    %566 = vmatprep.subr.bf16.mxu0 0
    %567 = vmatpush1.bf16.msra.mxu0 0
    %568 = vmatprep.subr.bf16.mxu0 0
    %569 = vmatpush1.bf16.msra.mxu0 0
    %570 = vmatprep.subr.bf16.mxu0 0
    %571 = vmatpush1.bf16.msra.mxu0 0
    %572 = vmatprep.subr.bf16.mxu0 0
    %573 = vmatpush1.bf16.msra.mxu0 0
    %574 = vmatprep.subr.bf16.mxu0 0
    %575 = vmatpush1.bf16.msra.mxu0 0
    %576 = vmatprep.subr.bf16.mxu0 0
    %577 = vmatpush1.bf16.msra.mxu0 0
    %578 = vmatprep.subr.bf16.mxu0 0
    %579 = vmatpush1.bf16.msra.mxu0 0
    %580 = vmatprep.subr.bf16.mxu0 0
    %581 = vmatpush1.bf16.msra.mxu0 0
    %582 = vmatprep.subr.bf16.mxu0 0
    %583 = vmatpush1.bf16.msra.mxu0 0
    %584 = vmatprep.subr.bf16.mxu0 0
    %585 = vmatpush1.bf16.msra.mxu0 0
    %586 = vmatprep.subr.bf16.mxu0 0
    %587 = vmatpush1.bf16.msra.mxu0 0
    %588 = vmatprep.subr.bf16.mxu0 0
    %589 = vmatpush1.bf16.msra.mxu0 0
    %590 = vmatprep.mubr.bf16.mxu0 0
    %591 = vmatmul.mubr.bf16.gmra.mrb[0].mxu0 %v553
    %v592 = vpop.f32.mrb[0].mxu0
    %v593 = vadd.f32 0.0, %v592
    %v594 = vpop.f32.mrb[0].mxu0
    %v595 = vpop.f32.mrb[0].mxu0
    %v596 = vadd.f32 0.0, %v595
    %v597 = vpop.f32.mrb[0].mxu0
    %598 = vmatprep.mubr.bf16.mxu0 0
    %599 = vmatmul.mubr.bf16.gmra.mrb[0].mxu0 %v556
    %v600 = vpop.f32.mrb[0].mxu0
    %v601 = vadd.f32 0.0, %v600
    %v602 = vpop.f32.mrb[0].mxu0
    %v603 = vpop.f32.mrb[0].mxu0
    %v604 = vadd.f32 0.0, %v603
    %v605 = vpop.f32.mrb[0].mxu0
    %606 = vdwg.mxu0
    %v607 = vpack.c.bf16 %v596, %v593
    %v608 = vpack.c.bf16 %v604, %v601
    %v609 = vld [vmem:[#allocation10] sm:$0xf]
    %v610 = vld [vmem:[#allocation10 + $0x4] sm:$0xf]
    %v611 = vld [vmem:[#allocation10 + $0x8] sm:$0xf]
    %v612 = vld [vmem:[#allocation10 + $0xc] sm:$0xf]
    %v613 = vld [vmem:[#allocation10 + $0x10] sm:$0xf]
    %v614 = vld [vmem:[#allocation10 + $0x14] sm:$0xf]
    %v615 = vld [vmem:[#allocation10 + $0x18] sm:$0xf]
    %v616 = vld [vmem:[#allocation10 + $0x1c] sm:$0xf]
    %v617 = vld [vmem:[#allocation10 + $0x20] sm:$0xf]
    %v618 = vld [vmem:[#allocation10 + $0x24] sm:$0xf]
    %v619 = vld [vmem:[#allocation10 + $0x28] sm:$0xf]
    %v620 = vld [vmem:[#allocation10 + $0x2c] sm:$0xf]
    %v621 = vld [vmem:[#allocation10 + $0x30] sm:$0xf]
    %v622 = vld [vmem:[#allocation10 + $0x34] sm:$0xf]
    %v623 = vld [vmem:[#allocation10 + $0x38] sm:$0xf]
    %v624 = vld [vmem:[#allocation10 + $0x3c] sm:$0xf]
    %v641 = vunpack.c.l.b16 %v609
    %v642 = vunpack.c.l.b16 %v610
    %v643 = vunpack.c.l.b16 %v611
    %v644 = vunpack.c.l.b16 %v612
    %v645 = vunpack.c.l.b16 %v613
    %v646 = vunpack.c.l.b16 %v614
    %v647 = vunpack.c.l.b16 %v615
    %v648 = vunpack.c.l.b16 %v616
    %v649 = vunpack.c.l.b16 %v617
    %v650 = vunpack.c.l.b16 %v618
    %v651 = vunpack.c.l.b16 %v619
    %v652 = vunpack.c.l.b16 %v620
    %v653 = vunpack.c.l.b16 %v621
    %v654 = vunpack.c.l.b16 %v622
    %v655 = vunpack.c.l.b16 %v623
    %v656 = vunpack.c.l.b16 %v624
    %v657 = vpack.c.b16 %v642, %v641
    %v658 = vpack.c.b16 %v644, %v643
    %v659 = vpack.c.b16 %v646, %v645
    %v660 = vpack.c.b16 %v648, %v647
    %v661 = vpack.c.b16 %v650, %v649
    %v662 = vpack.c.b16 %v652, %v651
    %v663 = vpack.c.b16 %v654, %v653
    %v664 = vpack.c.b16 %v656, %v655
    %673 = vmatprep.subr.bf16.mxu0 0
    %674 = vmatpush1.bf16.msra.mxu0 %v657
    %675 = vmatprep.subr.bf16.mxu0 0
    %676 = vmatpush1.bf16.msra.mxu0 %v658
    %677 = vmatprep.subr.bf16.mxu0 0
    %678 = vmatpush1.bf16.msra.mxu0 %v659
    %679 = vmatprep.subr.bf16.mxu0 0
    %680 = vmatpush1.bf16.msra.mxu0 %v660
    %681 = vmatprep.subr.bf16.mxu0 0
    %682 = vmatpush1.bf16.msra.mxu0 %v661
    %683 = vmatprep.subr.bf16.mxu0 0
    %684 = vmatpush1.bf16.msra.mxu0 %v662
    %685 = vmatprep.subr.bf16.mxu0 0
    %686 = vmatpush1.bf16.msra.mxu0 %v663
    %687 = vmatprep.subr.bf16.mxu0 0
    %688 = vmatpush1.bf16.msra.mxu0 %v664
    %689 = vmatprep.subr.bf16.mxu0 0
    %690 = vmatpush1.bf16.msra.mxu0 0
    %691 = vmatprep.subr.bf16.mxu0 0
    %692 = vmatpush1.bf16.msra.mxu0 0
    %693 = vmatprep.subr.bf16.mxu0 0
    %694 = vmatpush1.bf16.msra.mxu0 0
    %695 = vmatprep.subr.bf16.mxu0 0
    %696 = vmatpush1.bf16.msra.mxu0 0
    %697 = vmatprep.subr.bf16.mxu0 0
    %698 = vmatpush1.bf16.msra.mxu0 0
    %699 = vmatprep.subr.bf16.mxu0 0
    %700 = vmatpush1.bf16.msra.mxu0 0
    %701 = vmatprep.subr.bf16.mxu0 0
    %702 = vmatpush1.bf16.msra.mxu0 0
    %703 = vmatprep.subr.bf16.mxu0 0
    %704 = vmatpush1.bf16.msra.mxu0 0
    %705 = vmatprep.mubr.bf16.mxu0 0
    %706 = vmatmul.mubr.bf16.gmra.mrb[0].mxu0 %v607
    %v707 = vpop.f32.mrb[0].mxu0
    %v708 = vadd.f32 0.0, %v707
    %v709 = vpop.f32.mrb[0].mxu0
    %v710 = vpop.f32.mrb[0].mxu0
    %v711 = vadd.f32 0.0, %v710
    %v712 = vpop.f32.mrb[0].mxu0
    %713 = vmatprep.mubr.bf16.mxu0 0
    %714 = vmatmul.mubr.bf16.gmra.mrb[0].mxu0 %v608
    %v715 = vpop.f32.mrb[0].mxu0
    %v716 = vadd.f32 0.0, %v715
    %v717 = vpop.f32.mrb[0].mxu0
    %v718 = vpop.f32.mrb[0].mxu0
    %v719 = vadd.f32 0.0, %v718
    %v720 = vpop.f32.mrb[0].mxu0
    %721 = vdwg.mxu0
    %v722 = vtanh.pop %v708
    %v723 = vtanh.pop %v711
    %v724 = vtanh.pop %v716
    %v725 = vtanh.pop %v719
    %v726 = vadd.f32 %v536, %v722
    %v727 = vadd.f32 %v537, %v723
    %v728 = vadd.f32 %v538, %v724
    %v729 = vadd.f32 %v539, %v725
    %v730 = vpack.c.bf16 %v727, %v726
    %v731 = vpack.c.bf16 %v729, %v728
    %732 = vmatprep.subr.bf16.mxu0 0
    %733 = vmatpush1.bf16.msra.mxu0 %v730
    %734 = vmatprep.subr.bf16.mxu0 0
    %735 = vmatpush1.bf16.msra.mxu0 %v731
    %736 = vmatprep.subr.bf16.mxu0 0
    %737 = vmatpush1.bf16.msra.mxu0 0
    %738 = vmatprep.subr.bf16.mxu0 0
    %739 = vmatpush1.bf16.msra.mxu0 0
    %740 = vmatprep.subr.bf16.mxu0 0
    %741 = vmatpush1.bf16.msra.mxu0 0
    %742 = vmatprep.subr.bf16.mxu0 0
    %743 = vmatpush1.bf16.msra.mxu0 0
    %744 = vmatprep.subr.bf16.mxu0 0
    %745 = vmatpush1.bf16.msra.mxu0 0
    %746 = vmatprep.subr.bf16.mxu0 0
    %747 = vmatpush1.bf16.msra.mxu0 0
    %748 = vmatprep.subr.bf16.mxu0 0
    %749 = vmatpush1.bf16.msra.mxu0 0
    %750 = vmatprep.subr.bf16.mxu0 0
    %751 = vmatpush1.bf16.msra.mxu0 0
    %752 = vmatprep.subr.bf16.mxu0 0
    %753 = vmatpush1.bf16.msra.mxu0 0
    %754 = vmatprep.subr.bf16.mxu0 0
    %755 = vmatpush1.bf16.msra.mxu0 0
    %756 = vmatprep.subr.bf16.mxu0 0
    %757 = vmatpush1.bf16.msra.mxu0 0
    %758 = vmatprep.subr.bf16.mxu0 0
    %759 = vmatpush1.bf16.msra.mxu0 0
    %760 = vmatprep.subr.bf16.mxu0 0
    %761 = vmatpush1.bf16.msra.mxu0 0
    %762 = vmatprep.subr.bf16.mxu0 0
    %763 = vmatpush1.bf16.msra.mxu0 0
    %764 = vmatprep.mubr.bf16.mxu0 0
    %765 = vmatmul.mubr.bf16.gmra.mrb[0].mxu0 %v553
    %v766 = vpop.f32.mrb[0].mxu0
    %v767 = vadd.f32 0.0, %v766
    %v768 = vpop.f32.mrb[0].mxu0
    %v769 = vpop.f32.mrb[0].mxu0
    %v770 = vadd.f32 0.0, %v769
    %v771 = vpop.f32.mrb[0].mxu0
    %772 = vmatprep.mubr.bf16.mxu0 0
    %773 = vmatmul.mubr.bf16.gmra.mrb[0].mxu0 %v556
    %v774 = vpop.f32.mrb[0].mxu0
    %v775 = vadd.f32 0.0, %v774
    %v776 = vpop.f32.mrb[0].mxu0
    %v777 = vpop.f32.mrb[0].mxu0
    %v778 = vadd.f32 0.0, %v777
    %v779 = vpop.f32.mrb[0].mxu0
    %780 = vdwg.mxu0
    %v781 = vpack.c.bf16 %v770, %v767
    %v782 = vpack.c.bf16 %v778, %v775
    %s783 = scalar_lea.vmem [#allocation10], 64
    %v784 = vld [vmem:[%s783] sm:$0xf]
    %v785 = vld [vmem:[%s783 + $0x4] sm:$0xf]
    %v786 = vld [vmem:[%s783 + $0x8] sm:$0xf]
    %v787 = vld [vmem:[%s783 + $0xc] sm:$0xf]
    %v788 = vld [vmem:[%s783 + $0x10] sm:$0xf]
    %v789 = vld [vmem:[%s783 + $0x14] sm:$0xf]
    %v790 = vld [vmem:[%s783 + $0x18] sm:$0xf]
    %v791 = vld [vmem:[%s783 + $0x1c] sm:$0xf]
    %v792 = vld [vmem:[%s783 + $0x20] sm:$0xf]
    %v793 = vld [vmem:[%s783 + $0x24] sm:$0xf]
    %v794 = vld [vmem:[%s783 + $0x28] sm:$0xf]
    %v795 = vld [vmem:[%s783 + $0x2c] sm:$0xf]
    %v796 = vld [vmem:[%s783 + $0x30] sm:$0xf]
    %v797 = vld [vmem:[%s783 + $0x34] sm:$0xf]
    %v798 = vld [vmem:[%s783 + $0x38] sm:$0xf]
    %v799 = vld [vmem:[%s783 + $0x3c] sm:$0xf]
    %v816 = vunpack.c.l.b16 %v784
    %v817 = vunpack.c.l.b16 %v785
    %v818 = vunpack.c.l.b16 %v786
    %v819 = vunpack.c.l.b16 %v787
    %v820 = vunpack.c.l.b16 %v788
    %v821 = vunpack.c.l.b16 %v789
    %v822 = vunpack.c.l.b16 %v790
    %v823 = vunpack.c.l.b16 %v791
    %v824 = vunpack.c.l.b16 %v792
    %v825 = vunpack.c.l.b16 %v793
    %v826 = vunpack.c.l.b16 %v794
    %v827 = vunpack.c.l.b16 %v795
    %v828 = vunpack.c.l.b16 %v796
    %v829 = vunpack.c.l.b16 %v797
    %v830 = vunpack.c.l.b16 %v798
    %v831 = vunpack.c.l.b16 %v799
    %v832 = vpack.c.b16 %v817, %v816
    %v833 = vpack.c.b16 %v819, %v818
    %v834 = vpack.c.b16 %v821, %v820
    %v835 = vpack.c.b16 %v823, %v822
    %v836 = vpack.c.b16 %v825, %v824
    %v837 = vpack.c.b16 %v827, %v826
    %v838 = vpack.c.b16 %v829, %v828
    %v839 = vpack.c.b16 %v831, %v830
    %848 = vmatprep.subr.bf16.mxu0 0
    %849 = vmatpush1.bf16.msra.mxu0 %v832
    %850 = vmatprep.subr.bf16.mxu0 0
    %851 = vmatpush1.bf16.msra.mxu0 %v833
    %852 = vmatprep.subr.bf16.mxu0 0
    %853 = vmatpush1.bf16.msra.mxu0 %v834
    %854 = vmatprep.subr.bf16.mxu0 0
    %855 = vmatpush1.bf16.msra.mxu0 %v835
    %856 = vmatprep.subr.bf16.mxu0 0
    %857 = vmatpush1.bf16.msra.mxu0 %v836
    %858 = vmatprep.subr.bf16.mxu0 0
    %859 = vmatpush1.bf16.msra.mxu0 %v837
    %860 = vmatprep.subr.bf16.mxu0 0
    %861 = vmatpush1.bf16.msra.mxu0 %v838
    %862 = vmatprep.subr.bf16.mxu0 0
    %863 = vmatpush1.bf16.msra.mxu0 %v839
    %864 = vmatprep.subr.bf16.mxu0 0
    %865 = vmatpush1.bf16.msra.mxu0 0
    %866 = vmatprep.subr.bf16.mxu0 0
    %867 = vmatpush1.bf16.msra.mxu0 0
    %868 = vmatprep.subr.bf16.mxu0 0
    %869 = vmatpush1.bf16.msra.mxu0 0
    %870 = vmatprep.subr.bf16.mxu0 0
    %871 = vmatpush1.bf16.msra.mxu0 0
    %872 = vmatprep.subr.bf16.mxu0 0
    %873 = vmatpush1.bf16.msra.mxu0 0
    %874 = vmatprep.subr.bf16.mxu0 0
    %875 = vmatpush1.bf16.msra.mxu0 0
    %876 = vmatprep.subr.bf16.mxu0 0
    %877 = vmatpush1.bf16.msra.mxu0 0
    %878 = vmatprep.subr.bf16.mxu0 0
    %879 = vmatpush1.bf16.msra.mxu0 0
    %880 = vmatprep.mubr.bf16.mxu0 0
    %881 = vmatmul.mubr.bf16.gmra.mrb[0].mxu0 %v781
    %v882 = vpop.f32.mrb[0].mxu0
    %v883 = vadd.f32 0.0, %v882
    %v884 = vpop.f32.mrb[0].mxu0
    %v885 = vpop.f32.mrb[0].mxu0
    %v886 = vadd.f32 0.0, %v885
    %v887 = vpop.f32.mrb[0].mxu0
    %888 = vmatprep.mubr.bf16.mxu0 0
    %889 = vmatmul.mubr.bf16.gmra.mrb[0].mxu0 %v782
    %v890 = vpop.f32.mrb[0].mxu0
    %v891 = vadd.f32 0.0, %v890
    %v892 = vpop.f32.mrb[0].mxu0
    %v893 = vpop.f32.mrb[0].mxu0
    %v894 = vadd.f32 0.0, %v893
    %v895 = vpop.f32.mrb[0].mxu0
    %896 = vdwg.mxu0
    %v897 = vtanh.pop %v883
    %v898 = vtanh.pop %v886
    %v899 = vtanh.pop %v891
    %v900 = vtanh.pop %v894
    %v901 = vadd.f32 %v726, %v897
    %v902 = vadd.f32 %v727, %v898
    %v903 = vadd.f32 %v728, %v899
    %v904 = vadd.f32 %v729, %v900
    %905 = vst [vmem:[#allocation11] sm:$0xff] %v901
    %906 = vst [vmem:[#allocation11 + $0x8] sm:$0xff] %v902
    %907 = vst [vmem:[#allocation11 + $0x10] sm:$0xff] %v903
    %908 = vst [vmem:[#allocation11 + $0x18] sm:$0xff] %v904
    // Predicated region
    $region42: #{tpu_custom_call.1} parent=1 // pred_check
      _
    $region43: #{tpu_custom_call.1} parent=1 // pred_check_branch
      %910 = sbr.rel (0) target = $region45
    $region44: #{tpu_custom_call.1} parent=1 // pred_region
      %s912 = ssub.s32 512, 512
      %913 = vsyncadd [#allocation4], %s912
      %s914 = sshll.u32 [#allocation11], 4
      %s915 = int_to_ptr.vmem [resolvable:$true] %s914
      %920 = dma.vmem_to_hbm [thread:$0]  %s915, 512, %s5, [#allocation4], 128, 128, 8
    $region45: #{tpu_custom_call.1} parent=1 // pred_fallthru
      _
    // Predicated region
    $region46: #{tpu_custom_call.1} parent=1 // pred_check
      _
    $region47: #{tpu_custom_call.1} parent=1 // pred_check_branch
      %922 = sbr.rel (0) target = $region49
    $region48: #{tpu_custom_call.1} parent=1 // pred_region
      %923 = dma.done [#allocation4], 512
    $region49: #{tpu_custom_call.1} parent=1 // pred_fallthru
      _
    %924 = vsyncpa [#allocation3], 1
    %925 = vsyncpa [#allocation6], 1
    %926 = vsyncpa [#allocation9], 1
    %927 = vsyncpa [#allocation4], 1

</llo_original>
